<compile_context>
chip_gen: v5e
topology: v5e:2x2
jax: 0.10.0
libtpu: 0.0.40
codegen_flags: <defaults>
</compile_context>

<pallas_src>
import jax
import jax.numpy as jnp
from jax import lax
from jax.experimental import pallas as pl
from jax.experimental.pallas import tpu as pltpu


_LANES = 128


def _round_up(x, m):
    return ((x + m - 1) // m) * m


def _make_loss_kernel(*, tr, spc, n_true, use_mask):
    """Per-grid-step kernel.

    Accumulates into a per-core (2, 128) f32 VMEM scratch:
      row 0 : per-lane partial sums of (pred - target)^2          (MSE numerator)
      row 1 : [0,0] holds the partial sum of |1 - sqrt(c^2+s^2)|  (constraint numerator)
    and writes the per-core partials to its output block on the core's last step.
    """
    n_true = int(n_true)

    def kernel(cs_ref, pred_ref, targ_ref, out_ref, acc_ref):
        p = pl.program_id(0)   # parallel (per-core) axis
        j = pl.program_id(1)   # arbitrary (reduction) axis

        @pl.when(j == 0)
        def _init():
            acc_ref[...] = jnp.zeros_like(acc_ref)

        # ---- MSE partial: lane-dense tile, cast at load, VPU-only math -----
        pred = pred_ref[...].astype(jnp.float32)          # (tr, 128)
        targ = targ_ref[...].astype(jnp.float32)
        diff = pred - targ
        dsq = diff * diff
        if use_mask:
            # Mask ragged tail elements, the ragged last row-block, and any
            # duplicated (clamped) blocks on an uneven per-core split.  Uses the
            # *un-clamped* row-block id so out-of-range steps mask to zero.
            rb = p * spc + j
            row = lax.broadcasted_iota(jnp.int32, (tr, _LANES), 0) + rb * tr
            lane = lax.broadcasted_iota(jnp.int32, (tr, _LANES), 1)
            elem = row * _LANES + lane                    # global flat element id
            dsq = jnp.where(elem < n_true, dsq, 0.0)
        # Axis-0 reduction straight into one scratch row: no reshape, no copy.
        acc_ref[0:1, :] += jnp.sum(dsq, axis=0, keepdims=True)

        # ---- Trig constraint, folded into every pipelined step --------------
        cs = cs_ref[...].astype(jnp.float32)              # (2, chunk_b), batch on lanes
        c = cs[0:1, :]
        s = cs[1:2, :]
        norm = jnp.sqrt(c * c + s * s)
        # padded lanes carry (cos=1, sin=0) -> |1 - norm| == 0 there
        acc_ref[1:2, 0:1] += jnp.sum(jnp.abs(1.0 - norm), keepdims=True)

        @pl.when(j == spc - 1)
        def _finalize():
            out_ref[...] = acc_ref[...].reshape(1, 2, _LANES)

    return kernel


def mse_with_trig_constraint(prediction, target, trig_lagrangian=1.0,
                             tile_rows=2048, num_cores=2):
    """Pallas TPU implementation of MSEWithTrigConstraint.forward.

    prediction, target: (B, D) arrays with D >= 6. Returns a scalar float32.
    """
    assert prediction.shape == target.shape
    assert prediction.ndim == 2
    B, D = prediction.shape
    assert D >= 6, "need at least 6 feature columns (cos at 4, sin at 5)"
    assert tile_rows % 8 == 0 and tile_rows >= 8

    n_true = B * D

    # ---------------- Lane-dense MSE slab (no copy in the aligned case) -----
    rows = pl.cdiv(n_true, _LANES)
    pad_elems = rows * _LANES - n_true       # < 128; 0 whenever B*D % 128 == 0

    def to_slab(x):
        flat = x.reshape(-1)                 # bitcast reshape (row-major)
        if pad_elems:
            flat = jnp.pad(flat, (0, pad_elems))
        return flat.reshape(rows, _LANES)    # bitcast reshape

    pred_slab = to_slab(prediction)          # native dtype; cast in-kernel
    targ_slab = to_slab(target)

    # Row-block tiling over the slab.
    tr = rows if rows <= tile_rows else tile_rows
    r_blocks = pl.cdiv(rows, tr)

    # Megacore split: leading "parallel" axis with per-core partial outputs.
    np_ = num_cores if r_blocks >= num_cores else 1
    spc = pl.cdiv(r_blocks, np_)             # row-block steps per core
    n_steps_total = np_ * spc

    use_mask = (rows * _LANES != n_true) or (r_blocks * tr != rows) \
        or (n_steps_total != r_blocks)

    # ---------------- cos/sin columns, tiled across the grid steps ----------
    chunk_b = _round_up(pl.cdiv(B, n_steps_total), _LANES)
    total_b = n_steps_total * chunk_b
    cs = jnp.transpose(prediction[:, 4:6])   # (2, B), batch on lanes
    if total_b != B:
        extra = total_b - B
        pad_block = jnp.concatenate(
            [jnp.ones((1, extra), cs.dtype), jnp.zeros((1, extra), cs.dtype)],
            axis=0)                          # (cos=1, sin=0) -> contributes 0
        cs = jnp.concatenate([cs, pad_block], axis=1)      # (2, total_b)

    kernel = _make_loss_kernel(tr=tr, spc=spc, n_true=n_true, use_mask=use_mask)

    itemsize = jnp.dtype(prediction.dtype).itemsize
    cost = pl.CostEstimate(
        flops=3 * n_true + 6 * B,
        transcendentals=B,
        bytes_accessed=2 * n_true * itemsize + 2 * B * itemsize
        + np_ * 2 * _LANES * 4,
    )

    last_block = r_blocks - 1

    partials = pl.pallas_call(
        kernel,
        out_shape=jax.ShapeDtypeStruct((np_, 2, _LANES), jnp.float32),
        grid_spec=pltpu.PrefetchScalarGridSpec(
            num_scalar_prefetch=0,
            grid=(np_, spc),
            in_specs=[
                # cos/sin chunk for this step (small, auto double-buffered)
                pl.BlockSpec((2, chunk_b), lambda p, j: (0, p * spc + j)),
                # lane-dense MSE slabs; clamped row-block index (the in-kernel
                # element mask zeroes duplicated / ragged tail blocks)
                pl.BlockSpec(
                    (tr, _LANES),
                    lambda p, j: (jnp.minimum(p * spc + j, last_block), 0)),
                pl.BlockSpec(
                    (tr, _LANES),
                    lambda p, j: (jnp.minimum(p * spc + j, last_block), 0)),
            ],
            out_specs=pl.BlockSpec((1, 2, _LANES), lambda p, j: (p, 0, 0)),
            scratch_shapes=[pltpu.VMEM((2, _LANES), jnp.float32)],
        ),
        compiler_params=pltpu.CompilerParams(
            dimension_semantics=("parallel", "arbitrary"),
            allow_input_fusion=([False, True, True] if pad_elems else None),
        ),
        cost_estimate=cost,
    )(cs, pred_slab, targ_slab)

    # Trivial per-core combine + global scaling in the wrapper.
    mse = jnp.sum(partials[:, 0, :]) / n_true
    constraint = jnp.sum(partials[:, 1, :]) / B
    return (mse + trig_lagrangian * constraint).astype(jnp.float32)


def _reference(prediction, target, trig_lagrangian=1.0):
    pred = prediction.astype(jnp.float32)
    targ = target.astype(jnp.float32)
    mse = jnp.mean((pred - targ) ** 2)
    norm = jnp.sqrt(pred[:, 4] ** 2 + pred[:, 5] ** 2)
    constraint = jnp.mean(jnp.abs(1.0 - norm))
    return mse + trig_lagrangian * constraint


if __name__ == "__main__":
    key = jax.random.PRNGKey(0)
    k1, k2, k3, k4, k5, k6 = jax.random.split(key, 6)

    # 1) Small shape consistent with the module (D >= 6).  B*D=64 exercises the
    #    ragged (padded + element-masked) path with a single grid step.
    B, D = 8, 8
    prediction = jax.random.normal(k1, (B, D), dtype=jnp.float32)
    target = jax.random.normal(k2, (B, D), dtype=jnp.float32)
    loss = jax.block_until_ready(
        mse_with_trig_constraint(prediction, target, trig_lagrangian=1.0))
    ref = _reference(prediction, target, trig_lagrangian=1.0)
    assert jnp.allclose(loss, ref, rtol=1e-4, atol=1e-5), (loss, ref)

    # 2) bf16 inputs, B*D % 128 == 0 (zero-copy bitcast path), small tile to
    #    exercise the multi-step grid + dual "core" split (grid (2, 2)).
    B2, D2 = 512, 8
    prediction2 = jax.random.normal(k3, (B2, D2), dtype=jnp.bfloat16)
    target2 = jax.random.normal(k4, (B2, D2), dtype=jnp.bfloat16)
    loss2 = jax.block_until_ready(
        mse_with_trig_constraint(prediction2, target2, trig_lagrangian=0.5,
                                 tile_rows=8))
    ref2 = _reference(prediction2, target2, trig_lagrangian=0.5)
    assert jnp.allclose(loss2, ref2, rtol=1e-4, atol=1e-5), (loss2, ref2)

    # 3) Ragged everything: B*D % 128 != 0, ragged last row-block, per-core
    #    split, and padded cos/sin lanes (grid (2, 1)).
    B3, D3 = 300, 6
    prediction3 = jax.random.normal(k5, (B3, D3), dtype=jnp.float32)
    target3 = jax.random.normal(k6, (B3, D3), dtype=jnp.float32)
    loss3 = jax.block_until_ready(
        mse_with_trig_constraint(prediction3, target3, trig_lagrangian=2.0,
                                 tile_rows=8))
    ref3 = _reference(prediction3, target3, trig_lagrangian=2.0)
    assert jnp.allclose(loss3, ref3, rtol=1e-4, atol=1e-5), (loss3, ref3)

    print("KERNEL_OK")
</pallas_src>

<mosaic_0001>
module attributes {stable_mosaic.version = 11 : i64} {
  func.func @kernel(%arg0: i32, %arg1: i32, %arg2: memref<2x128xf32, #tpu.memory_space<vmem>>, %arg3: memref<1x128xf32, #tpu.memory_space<vmem>>, %arg4: memref<1x128xf32, #tpu.memory_space<vmem>>, %arg5: memref<1x2x128xf32, #tpu.memory_space<vmem>>, %arg6: memref<2x128xf32, #tpu.memory_space<vmem>>) attributes {dimension_semantics = [#tpu.dimension_semantics<parallel>, #tpu.dimension_semantics<arbitrary>], iteration_bounds = array<i64: 1, 1>, scalar_prefetch = 0 : i64, scratch_operands = 1 : i64, tpu.core_type = #tpu.core_type<tc>, window_params = [{transform_indices = @transform_0, window_bounds = array<i64: 2, 128>}, {transform_indices = @transform_1, window_bounds = array<i64: 1, 128>}, {transform_indices = @transform_2, window_bounds = array<i64: 1, 128>}, {transform_indices = @transform_3, window_bounds = array<i64: 1, 2, 128>}]} {
    %c0_i32 = arith.constant 0 : i32
    %0 = arith.cmpi eq, %arg1, %c0_i32 : i32
    %1 = arith.extui %0 : i1 to i32
    %c0_i32_0 = arith.constant 0 : i32
    %2 = arith.cmpi ne, %1, %c0_i32_0 : i32
    scf.if %2 {
      %cst_19 = arith.constant 0.000000e+00 : f32
      %47 = vector.broadcast %cst_19 : f32 to vector<2x128xf32>
      %c0_20 = arith.constant 0 : index
      %c0_21 = arith.constant 0 : index
      %48 = vector.load %arg6[%c0_20, %c0_21] : memref<2x128xf32, #tpu.memory_space<vmem>>, vector<2x128xf32>
      tpu.vector_store %arg6[%c0_20, %c0_21], %47 {strides = array<i32>} : memref<2x128xf32, #tpu.memory_space<vmem>>, vector<2x128xf32>,
    } else {
    }
    %c0 = arith.constant 0 : index
    %c0_1 = arith.constant 0 : index
    %3 = vector.load %arg3[%c0, %c0_1] : memref<1x128xf32, #tpu.memory_space<vmem>>, vector<1x128xf32>
    %c0_2 = arith.constant 0 : index
    %c0_3 = arith.constant 0 : index
    %4 = vector.load %arg4[%c0_2, %c0_3] : memref<1x128xf32, #tpu.memory_space<vmem>>, vector<1x128xf32>
    %5 = arith.subf %3, %4 : vector<1x128xf32>
    %6 = arith.mulf %5, %5 : vector<1x128xf32>
    %c1_i32 = arith.constant 1 : i32
    %7 = arith.muli %arg0, %c1_i32 : i32
    %8 = arith.addi %7, %arg1 : i32
    %9 = tpu.iota {dimensions = array<i32: 0>} : vector<1x128xi32>
    %c1_i32_4 = arith.constant 1 : i32
    %10 = arith.muli %8, %c1_i32_4 : i32
    %11 = vector.broadcast %10 : i32 to vector<1x128xi32>
    %12 = arith.addi %9, %11 : vector<1x128xi32>
    %13 = tpu.iota {dimensions = array<i32: 1>} : vector<1x128xi32>
    %c128_i32 = arith.constant 128 : i32
    %14 = vector.broadcast %c128_i32 : i32 to vector<1x128xi32>
    %15 = arith.muli %12, %14 : vector<1x128xi32>
    %16 = arith.addi %15, %13 : vector<1x128xi32>
    %c64_i32 = arith.constant 64 : i32
    %17 = vector.broadcast %c64_i32 : i32 to vector<1x128xi32>
    %18 = arith.cmpi slt, %16, %17 : vector<1x128xi32>
    %cst = arith.constant 0.000000e+00 : f32
    %19 = vector.broadcast %cst : f32 to vector<1x128xf32>
    %20 = arith.select %18, %6, %19 : vector<1x128xi1>, vector<1x128xf32>
    %c0_5 = arith.constant 0 : index
    %c0_6 = arith.constant 0 : index
    %21 = vector.load %arg6[%c0_5, %c0_6] : memref<2x128xf32, #tpu.memory_space<vmem>>, vector<1x128xf32>
    %cst_7 = arith.constant dense<0.000000e+00> : vector<128xf32>
    %22 = vector.multi_reduction <add>, %20, %cst_7 [0] : vector<1x128xf32> to vector<128xf32>
    %23 = vector.shape_cast %22 : vector<128xf32> to vector<1x128xf32>
    %24 = arith.addf %21, %23 : vector<1x128xf32>
    %c0_8 = arith.constant 0 : index
    %c0_9 = arith.constant 0 : index
    %25 = vector.load %arg6[%c0_8, %c0_9] : memref<2x128xf32, #tpu.memory_space<vmem>>, vector<1x128xf32>
    tpu.vector_store %arg6[%c0_8, %c0_9], %24 {strides = array<i32>} : memref<2x128xf32, #tpu.memory_space<vmem>>, vector<1x128xf32>,
    %c0_10 = arith.constant 0 : index
    %c0_11 = arith.constant 0 : index
    %26 = vector.load %arg2[%c0_10, %c0_11] : memref<2x128xf32, #tpu.memory_space<vmem>>, vector<2x128xf32>
    %27 = vector.extract_strided_slice %26 {offsets = [0, 0], sizes = [1, 128], strides = [1, 1]} : vector<2x128xf32> to vector<1x128xf32>
    %28 = vector.extract_strided_slice %26 {offsets = [1, 0], sizes = [1, 128], strides = [1, 1]} : vector<2x128xf32> to vector<1x128xf32>
    %29 = arith.mulf %27, %27 : vector<1x128xf32>
    %30 = arith.mulf %28, %28 : vector<1x128xf32>
    %31 = arith.addf %29, %30 : vector<1x128xf32>
    %32 = math.sqrt %31 : vector<1x128xf32>
    %c1 = arith.constant 1 : index
    %c0_12 = arith.constant 0 : index
    %33 = vector.load %arg6[%c1, %c0_12] : memref<2x128xf32, #tpu.memory_space<vmem>>, vector<1x1xf32>
    %cst_13 = arith.constant 1.000000e+00 : f32
    %34 = vector.broadcast %cst_13 : f32 to vector<1x128xf32>
    %35 = arith.subf %34, %32 : vector<1x128xf32>
    %36 = math.absf %35 : vector<1x128xf32>
    %37 = vector.shape_cast %36 : vector<1x128xf32> to vector<1x1x128xf32>
    %cst_14 = arith.constant dense<0.000000e+00> : vector<1xf32>
    %38 = vector.multi_reduction <add>, %37, %cst_14 [1, 2] : vector<1x1x128xf32> to vector<1xf32>
    %39 = vector.shape_cast %38 : vector<1xf32> to vector<1x1x1xf32>
    %40 = vector.extract %39[0, 0, 0] : f32 from vector<1x1x1xf32>
    %41 = vector.broadcast %40 : f32 to vector<1x1xf32>
    %42 = arith.addf %33, %41 : vector<1x1xf32>
    %c1_15 = arith.constant 1 : index
    %c0_16 = arith.constant 0 : index
    %43 = vector.load %arg6[%c1_15, %c0_16] : memref<2x128xf32, #tpu.memory_space<vmem>>, vector<1x1xf32>
    tpu.vector_store %arg6[%c1_15, %c0_16], %42 {strides = array<i32>} : memref<2x128xf32, #tpu.memory_space<vmem>>, vector<1x1xf32>,
    %c0_i32_17 = arith.constant 0 : i32
    %44 = arith.cmpi eq, %arg1, %c0_i32_17 : i32
    %45 = arith.extui %44 : i1 to i32
    %c0_i32_18 = arith.constant 0 : i32
    %46 = arith.cmpi ne, %45, %c0_i32_18 : i32
    scf.if %46 {
      %c0_19 = arith.constant 0 : index
      %c0_20 = arith.constant 0 : index
      %47 = vector.load %arg6[%c0_19, %c0_20] : memref<2x128xf32, #tpu.memory_space<vmem>>, vector<2x128xf32>
      %48 = vector.shape_cast %47 : vector<2x128xf32> to vector<1x2x128xf32>
      %c0_21 = arith.constant 0 : index
      %c0_22 = arith.constant 0 : index
      %c0_23 = arith.constant 0 : index
      %49 = vector.load %arg5[%c0_21, %c0_22, %c0_23] : memref<1x2x128xf32, #tpu.memory_space<vmem>>, vector<1x2x128xf32>
      tpu.vector_store %arg5[%c0_21, %c0_22, %c0_23], %48 {strides = array<i32>} : memref<1x2x128xf32, #tpu.memory_space<vmem>>, vector<1x2x128xf32>,
    } else {
    }
    return
  }
  func.func @transform_0(%arg0: i32, %arg1: i32) -> (i32, i32) {
    %c1_i32 = arith.constant 1 : i32
    %0 = arith.muli %arg0, %c1_i32 : i32
    %1 = arith.addi %0, %arg1 : i32
    %c0_i32 = arith.constant 0 : i32
    %c0_i32_0 = arith.constant 0 : i32
    return %c0_i32, %1 : i32, i32
  }
  func.func @transform_1(%arg0: i32, %arg1: i32) -> (i32, i32) {
    %c1_i32 = arith.constant 1 : i32
    %0 = arith.muli %arg0, %c1_i32 : i32
    %1 = arith.addi %0, %arg1 : i32
    %c0_i32 = arith.constant 0 : i32
    %2 = arith.minsi %1, %c0_i32 : i32
    %c0_i32_0 = arith.constant 0 : i32
    %c0_i32_1 = arith.constant 0 : i32
    return %2, %c0_i32_0 : i32, i32
  }
  func.func @transform_2(%arg0: i32, %arg1: i32) -> (i32, i32) {
    %c1_i32 = arith.constant 1 : i32
    %0 = arith.muli %arg0, %c1_i32 : i32
    %1 = arith.addi %0, %arg1 : i32
    %c0_i32 = arith.constant 0 : i32
    %2 = arith.minsi %1, %c0_i32 : i32
    %c0_i32_0 = arith.constant 0 : i32
    %c0_i32_1 = arith.constant 0 : i32
    return %2, %c0_i32_0 : i32, i32
  }
  func.func @transform_3(%arg0: i32, %arg1: i32) -> (i32, i32, i32) {
    %c0_i32 = arith.constant 0 : i32
    %c0_i32_0 = arith.constant 0 : i32
    %c0_i32_1 = arith.constant 0 : i32
    return %arg0, %c0_i32, %c0_i32_0 : i32, i32, i32
  }
}

</mosaic_0001>

<llo_original>
// kernel: tpu_custom_call.1
$region0: #{tpu_custom_call.1}
  #allocation0 [shape = 'u32[]', space=smem, size = 0x4, offset = 0x4, fixed_abs, tag = 'smem constant byte address 0x4 - core index']
  #allocation1 [shape = 'u32[72,128]{1,0:T(1,128)}', space=vmem, size = 0x9000, scoped, tag = 'internal scratch']
  #allocation2 [shape = 'f32[2,128]{1,0:T(2,128)}', space=vmem, size = 0x400, scoped, tag = 'scratch operand']
  %s0 = inlined_call_operand.hbm [shape: f32[2,128], index: 0, kind: input, shape index: {}]
  %s1 = inlined_call_operand.hbm [shape: f32[1,128], index: 1, kind: input, shape index: {}]
  %s2 = inlined_call_operand.vmem [shape: f32[1,128], index: 2, kind: input, shape index: {}]
  %s3 = inlined_call_operand.hbm [shape: f32[1,2,128], index: 3, kind: output, shape index: {}]
  %s4 = sld [smem:[#allocation0]]
  $region38: #{tpu_custom_call.1} parent=0
    _
  %s6 = ssub.s32 1, %s4
  %s7 = scalar_select 0, %s6, %s4
  $region1: #{tpu_custom_call.1} parent=0
    #allocation3 [shape = 'u8[1024]{0}', space=vmem, size = 0x400, scoped, tag = 'input window, operand 0, single buffered']
    #allocation4 [shape = 's32[1]{0}', space=sflag, size = 0x4, scoped, tag = 'scoped memory for tpu_custom_call.1']
    #allocation5 [shape = 's32[1]{0}', space=sflag, size = 0x4, scoped, tag = 'scoped memory for tpu_custom_call.1']
    #allocation6 [shape = 'u8[512]{0}', space=vmem, size = 0x400, scoped, tag = 'input window, operand 1, single buffered']
    #allocation7 [shape = 's32[1]{0}', space=sflag, size = 0x4, scoped, tag = 'scoped memory for tpu_custom_call.1']
    #allocation8 [shape = 'u8[1024]{0}', space=vmem, size = 0x400, scoped, tag = 'output window, operand 0, single buffered']
    %8 = vsyncpa [#allocation4], 0
    %9 = vsyncpa [#allocation7], 0
    %10 = vsyncpa [#allocation5], 0
    // Predicated region
    $region2: #{tpu_custom_call.1} parent=1 // pred_check
      _
    $region3: #{tpu_custom_call.1} parent=1 // pred_check_branch
      %12 = sbr.rel (0) target = $region5
    $region4: #{tpu_custom_call.1} parent=1 // pred_region
      %s13 = sadd.s32 0, 0
      %15 = vsyncadd [#allocation4], 0
      %s16 = smul.addr %s13, 2
      %s17 = scalar_lea.hbm %s0, %s16
      %s19 = sshll.u32 %s17, 4
      %s20 = int_to_ptr.hbm [resolvable:$true] %s19
      %s21 = sshll.u32 [#allocation3], 4
      %s22 = int_to_ptr.vmem [resolvable:$true] %s21
      %24 = dma.hbm_to_vmem [thread:$0]  %s20, 32, %s22, [#allocation4]
    $region5: #{tpu_custom_call.1} parent=1 // pred_fallthru
      _
    // Predicated region
    $region6: #{tpu_custom_call.1} parent=1 // pred_check
      _
    $region7: #{tpu_custom_call.1} parent=1 // pred_check_branch
      %26 = sbr.rel (0) target = $region9
    $region8: #{tpu_custom_call.1} parent=1 // pred_region
      %s27 = sadd.s32 0, 0
      %p28 = scmp.lt.s32.totalorder %s27, 0
      %s29 = scalar_select %p28, %s27, 0
      %31 = vsyncadd [#allocation7], 0
      %s32 = scalar_lea.hbm %s1, %s29
      %s34 = sshll.u32 %s32, 4
      %s35 = int_to_ptr.hbm [resolvable:$true] %s34
      %s36 = sshll.u32 [#allocation6], 4
      %s37 = int_to_ptr.vmem [resolvable:$true] %s36
      %39 = dma.hbm_to_vmem [thread:$0]  %s35, 16, %s37, [#allocation7]
    $region9: #{tpu_custom_call.1} parent=1 // pred_fallthru
      _
    // Predicated region
    $region10: #{tpu_custom_call.1} parent=1 // pred_check
      _
    $region11: #{tpu_custom_call.1} parent=1 // pred_check_branch
      %41 = sbr.rel (0) target = $region13
    $region12: #{tpu_custom_call.1} parent=1 // pred_region
      %s42 = sadd.s32 0, 0
      %p43 = scmp.lt.s32.totalorder %s42, 0
      %s44 = scalar_select %p43, %s42, 0
      %p45 = scmp.lt.s32.totalorder %s44, 0
      %s46 = scalar_select %p45, %s44, 0
      %s47 = scalar_lea.vmem %s2, %s46
      %s48 = sadd.s32 0, 0
      %p49 = scmp.lt.s32.totalorder %s48, 0
      %s50 = scalar_select %p49, %s48, 0
    $region13: #{tpu_custom_call.1} parent=1 // pred_fallthru
      _
    // Predicated region
    $region14: #{tpu_custom_call.1} parent=1 // pred_check
      _
    $region15: #{tpu_custom_call.1} parent=1 // pred_check_branch
      %52 = sbr.rel (0) target = $region17
    $region16: #{tpu_custom_call.1} parent=1 // pred_region
      %54 = dma.done [#allocation4], 32
    $region17: #{tpu_custom_call.1} parent=1 // pred_fallthru
      _
    // Predicated region
    $region18: #{tpu_custom_call.1} parent=1 // pred_check
      _
    $region19: #{tpu_custom_call.1} parent=1 // pred_check_branch
      %56 = sbr.rel (0) target = $region21
    $region20: #{tpu_custom_call.1} parent=1 // pred_region
      %58 = dma.done [#allocation7], 16
    $region21: #{tpu_custom_call.1} parent=1 // pred_fallthru
      _
    %s59 = sadd.s32 0, 0
    %p60 = scmp.lt.s32.totalorder %s59, 0
    %s61 = scalar_select %p60, %s59, 0
    %p62 = scmp.lt.s32.totalorder %s61, 0
    %s63 = scalar_select %p62, %s61, 0
    %s64 = scalar_lea.vmem %s2, %s63
    %s65 = sadd.s32 0, 0
    %s66 = sadd.s32 0, 0
    %p67 = scmp.lt.s32.totalorder %s66, 0
    %s68 = scalar_select %p67, %s66, 0
    %s69 = sadd.s32 0, 0
    %p70 = scmp.lt.s32.totalorder %s69, 0
    %s71 = scalar_select %p70, %s69, 0
    %p72 = scmp.lt.s32.totalorder %s71, 0
    %s73 = scalar_select %p72, %s71, 0
    %s74 = scalar_lea.vmem %s2, %s73
    %s75 = sadd.s32 0, 0
    %p76 = scmp.lt.s32.totalorder %s75, 0
    %s77 = scalar_select %p76, %s75, 0
    %p78 = scmp.eq.s32.totalorder 0, 0
    // Predicated region
    $region22: #{tpu_custom_call.1} parent=1 // pred_check
      %p79 = pneg %p78
    $region23: #{tpu_custom_call.1} parent=1 // pred_check_branch
      %81 = sbr.rel (%p79) target = $region25
    $region24: #{tpu_custom_call.1} parent=1 // pred_region
      %82 = vst [vmem:[#allocation2] sm:$0x3] 0.0
    $region25: #{tpu_custom_call.1} parent=1 // pred_fallthru
      _
    %v83 = vld [vmem:[#allocation6] sm:$0x1]
    %v84 = vld [vmem:[%s74] sm:$0x1]
    %v85 = vsub.f32 %v83, %v84
    %v86 = vmul.f32 %v85, %v85
    %s87 = sadd.s32 0, 0
    %v88 = vlaneseq
    %v89 = vshrl.u32 %v88, 7
    %v90 = vstv %s87
    %v91 = vadd.s32 %v89, %v90
    %v92 = vlaneseq
    %v93 = vand.u32 %v92, 127
    %v94 = vmul.u32 %v91, 128
    %v95 = vadd.s32 %v94, %v93
    %vm96 = vcmp.lt.s32.totalorder %v95, 64
    %v97 = vsel %vm96, %v86, 0.0
    %v98 = vld [vmem:[#allocation2] sm:$0x1]
    %v99 = vadd.f32 %v97, 0.0
    %v100 = vadd.f32 %v98, %v99
    %101 = vst [vmem:[#allocation2] sm:$0x1] %v100
    %v102 = vld [vmem:[#allocation3] sm:$0x3]
    %v103 = vmul.f32 %v102, %v102
    %v105 = vrot.slane %v103, 1
    %v107 = vadd.f32 %v103, %v105
    %v108 = vrsqrt.pop %v107
    %v109 = vmul.f32 %v108, %v107
    %v110 = vmul.f32 %v109, %v108
    %v111 = vmul.f32 0.5, %v110
    %v112 = vsub.f32 1.5, %v111
    %v113 = vmul.f32 %v108, %v112
    %v114 = vmul.f32 %v107, %v113
    %vm115 = vcmp.eq.f32.partialorder %v107, inf
    %v116 = vsel %vm115, %v107, %v114
    %vm117 = vcmp.eq.f32.partialorder %v107, 0.0
    %v118 = vand.u32 %v107, 2147483648
    %v119 = vsel %vm117, %v118, %v116
    %v120 = vld [vmem:[#allocation2 + $0x1] sm:$0x1]
    %v121 = vsub.f32 1.0, %v119
    %v122 = vand.u32 2147483647, %v121
    %vm123 = vcmask 1040384
    %v124 = vsel %vm123, %v122, 0.0
    %125 = vadd.xlane.f32.xlu0 %v124
    %v126 = vpop.xlane.xlu0 %125
    %v127 = vrot.slane %v126, 4
    %v128 = vadd.f32 %v126, %v127
    %v129 = vrot.slane %v128, 2
    %v130 = vadd.f32 %v128, %v129
    %v131 = vrot.slane %v130, 1
    %v132 = vadd.f32 %v130, %v131
    %s133 = vtos %v132
    %v134 = vstv %s133
    %v135 = vadd.f32 %v120, %v134
    %vm136 = vcmask 0
    %137 = vst.msk [vmem:[#allocation2 + $0x1] sm:$0x1] %vm136, %v135
    // Predicated region
    $region26: #{tpu_custom_call.1} parent=1 // pred_check
      %p138 = pneg %p78
    $region27: #{tpu_custom_call.1} parent=1 // pred_check_branch
      %140 = sbr.rel (%p138) target = $region29
    $region28: #{tpu_custom_call.1} parent=1 // pred_region
      %v141 = vld [vmem:[#allocation2] sm:$0x3]
      %142 = vst [vmem:[#allocation8] sm:$0x3] %v141
    $region29: #{tpu_custom_call.1} parent=1 // pred_fallthru
      _
    // Predicated region
    $region30: #{tpu_custom_call.1} parent=1 // pred_check
      _
    $region31: #{tpu_custom_call.1} parent=1 // pred_check_branch
      %144 = sbr.rel (0) target = $region33
    $region32: #{tpu_custom_call.1} parent=1 // pred_region
      %146 = vsyncadd [#allocation5], 0
      %s148 = sshll.u32 [#allocation8], 4
      %s149 = int_to_ptr.vmem [resolvable:$true] %s148
      %s150 = sshll.u32 %s3, 4
      %s151 = int_to_ptr.hbm [resolvable:$true] %s150
      %153 = dma.vmem_to_hbm [thread:$0]  %s149, 32, %s151, [#allocation5]
    $region33: #{tpu_custom_call.1} parent=1 // pred_fallthru
      _
    // Predicated region
    $region34: #{tpu_custom_call.1} parent=1 // pred_check
      _
    $region35: #{tpu_custom_call.1} parent=1 // pred_check_branch
      %155 = sbr.rel (0) target = $region37
    $region36: #{tpu_custom_call.1} parent=1 // pred_region
      %157 = dma.done [#allocation5], 32
    $region37: #{tpu_custom_call.1} parent=1 // pred_fallthru
      _
    %158 = vsyncpa [#allocation4], 1
    %159 = vsyncpa [#allocation7], 1
    %160 = vsyncpa [#allocation5], 1

</llo_original>
